<compile_context>
chip_gen: v7x
topology: tpu7x:2x2x1
jax: 0.10.0
libtpu: 0.0.40
codegen_flags: <defaults>
</compile_context>

<pallas_src>
import functools

import jax
import jax.numpy as jnp
from jax.experimental import pallas as pl
from jax.experimental.pallas import tpu as pltpu


# ---------------------------------------------------------------------------
# Hardware probing (best effort; safe fallbacks)
# ---------------------------------------------------------------------------
def _vmem_capacity_bytes():
    try:
        return int(pltpu.get_tpu_info().vmem_capacity_bytes)
    except Exception:
        return 64 * 1024 * 1024  # conservative (v7x per-TC size)


def _num_tensorcores():
    try:
        kind = jax.devices()[0].device_kind.lower()
        if "v7" in kind or "7x" in kind:
            return 2
    except Exception:
        pass
    return 1


def _block_budget_bytes(vmem_cap):
    # 2 buffers x (in + out) blocks must sit comfortably under the physical cap.
    if vmem_cap <= 64 * 1024 * 1024:      # v7x-class (64 MiB / TC)
        return 6 * 1024 * 1024
    return 12 * 1024 * 1024               # v5e / v6e (128 MiB)


# ---------------------------------------------------------------------------
# Tiling helpers
# ---------------------------------------------------------------------------
def _pick_batch_tile(B, per_sample_bytes, budget_bytes, num_cores):
    """Largest divisor of B whose block fits the budget; on multi-core chips
    keep enough grid steps for balanced 'parallel' sharding."""
    tb = int(max(1, min(B, budget_bytes // max(1, per_sample_bytes))))
    while B % tb:
        tb -= 1
    if num_cores > 1 and B > 1:
        min_steps = min(B, 4 * num_cores)
        while tb > 1 and (B // tb) < min_steps:
            tb -= 1
            while B % tb:
                tb -= 1
    return tb


def _pick_channel_tile(C, hw, itemsize, budget_bytes):
    """Divisor of C (multiple of 8, or C itself) whose (cc, HW) block fits."""
    smallest_valid = C
    for cc in range(C, 0, -1):
        if C % cc:
            continue
        if cc != C and cc % 8:
            continue
        if cc * hw * itemsize <= budget_bytes:
            return cc
        smallest_valid = cc
    # TODO(synk): if even the smallest channel chunk exceeds the budget,
    # additionally chunk HW (needs 128-multiple HW chunks).
    return smallest_valid


# ---------------------------------------------------------------------------
# Kernels
# ---------------------------------------------------------------------------
def _se_fused_kernel(x_ref, w1t_ref, w2t_ref, o_ref):
    """Single-pass SE block. x_ref/o_ref: (TB, C, HW); weights pre-transposed."""
    # Squeeze: global average pool, f32 accumulation fused into the reduce.
    y = jnp.mean(x_ref[...], axis=-1, dtype=jnp.float32)            # (TB, C)

    # Excitation: Linear(C->hidden) + ReLU, Linear(hidden->C) + sigmoid.
    h = jnp.dot(y, w1t_ref[...], preferred_element_type=jnp.float32)
    h = jnp.maximum(h, 0.0)
    s = jnp.dot(h, w2t_ref[...], preferred_element_type=jnp.float32)
    s = jax.nn.sigmoid(s).astype(o_ref.dtype)                        # (TB, C)

    # Scale: exactly one multiply per element, done at the store site in the
    # native dtype (no full-block f32 temp on the store path).
    o_ref[...] = (x_ref[...] * s[:, :, None]).astype(o_ref.dtype)


def _pool_kernel(x_ref, o_ref):
    """x_ref: (1, cc, HW) -> o_ref: (1, cc, 1) channel means (f32)."""
    o_ref[...] = jnp.mean(x_ref[...], axis=-1, dtype=jnp.float32)[:, :, None]


def _scale_kernel(x_ref, g_ref, o_ref):
    """x_ref: (1, cc, HW), g_ref: (1, cc, 1) gate -> o_ref = x * g."""
    o_ref[...] = (x_ref[...] * g_ref[...].astype(x_ref.dtype)).astype(o_ref.dtype)


# ---------------------------------------------------------------------------
# Wrappers
# ---------------------------------------------------------------------------
def _se_single_pass(x3, w1t, w2t, budget, num_cores):
    B, C, HW = x3.shape
    hidden = w1t.shape[1]
    itemsize = x3.dtype.itemsize
    per_sample = C * HW * itemsize

    tb = _pick_batch_tile(B, per_sample, budget, num_cores)
    grid = (B // tb,)
    block_shape = (tb, C, HW)
    block_bytes = tb * per_sample
    weight_bytes = (w1t.size * w1t.dtype.itemsize) + (w2t.size * w2t.dtype.itemsize)
    # 2-deep pipelining of in + out blocks, double-buffered weights, + slack.
    vmem_limit = max(2 * 2 * block_bytes + 2 * weight_bytes + 2 * 1024 * 1024,
                     32 * 1024 * 1024)

    cost = pl.CostEstimate(
        flops=3 * B * C * HW + 4 * B * C * hidden,
        transcendentals=B * C,
        bytes_accessed=2 * x3.size * itemsize + weight_bytes,
    )

    return pl.pallas_call(
        _se_fused_kernel,
        out_shape=jax.ShapeDtypeStruct(x3.shape, x3.dtype),
        grid_spec=pltpu.PrefetchScalarGridSpec(
            num_scalar_prefetch=0,
            grid=grid,
            in_specs=[
                pl.BlockSpec(block_shape, lambda b: (b, 0, 0)),
                pl.BlockSpec((C, hidden), lambda b: (0, 0)),
                pl.BlockSpec((hidden, C), lambda b: (0, 0)),
            ],
            out_specs=pl.BlockSpec(block_shape, lambda b: (b, 0, 0)),
        ),
        compiler_params=pltpu.CompilerParams(
            dimension_semantics=("parallel",),
            vmem_limit_bytes=int(vmem_limit),
        ),
        cost_estimate=cost,
    )(x3, w1t, w2t)


def _se_two_pass(x3, w1t, w2t, budget, num_cores):
    """Fallback when a single sample doesn't fit a VMEM block: channel-chunked
    pool kernel -> tiny excitation in plain JAX -> channel-chunked scale."""
    del num_cores
    B, C, HW = x3.shape
    itemsize = x3.dtype.itemsize
    cc = _pick_channel_tile(C, HW, itemsize, budget)
    grid = (B, C // cc)
    blk_bytes = cc * HW * itemsize
    vmem_limit = int(max(2 * 2 * blk_bytes + 4 * 1024 * 1024, 32 * 1024 * 1024))

    x_spec = pl.BlockSpec((1, cc, HW), lambda b, j: (b, j, 0))
    g_spec = pl.BlockSpec((1, cc, 1), lambda b, j: (b, j, 0))
    params = pltpu.CompilerParams(
        dimension_semantics=("parallel", "parallel"),
        vmem_limit_bytes=vmem_limit,
    )

    pooled = pl.pallas_call(
        _pool_kernel,
        out_shape=jax.ShapeDtypeStruct((B, C, 1), jnp.float32),
        grid_spec=pltpu.PrefetchScalarGridSpec(
            num_scalar_prefetch=0, grid=grid,
            in_specs=[x_spec], out_specs=g_spec),
        compiler_params=params,
        cost_estimate=pl.CostEstimate(
            flops=B * C * HW, transcendentals=0,
            bytes_accessed=x3.size * itemsize),
    )(x3)

    # Excitation on the tiny (B, C) vector: negligible, plain JAX.
    y = pooled[:, :, 0]
    h = jnp.maximum(y @ w1t.astype(jnp.float32), 0.0)
    gates = jax.nn.sigmoid(h @ w2t.astype(jnp.float32)).astype(x3.dtype)
    gates3 = gates[:, :, None]                                      # (B, C, 1)

    return pl.pallas_call(
        _scale_kernel,
        out_shape=jax.ShapeDtypeStruct(x3.shape, x3.dtype),
        grid_spec=pltpu.PrefetchScalarGridSpec(
            num_scalar_prefetch=0, grid=grid,
            in_specs=[x_spec, g_spec], out_specs=x_spec),
        compiler_params=params,
        cost_estimate=pl.CostEstimate(
            flops=B * C * HW, transcendentals=0,
            bytes_accessed=2 * x3.size * itemsize),
    )(x3, gates3)


def se_block(x, w1, w2):
    """SE block forward.
    x: (B, C, H, W) NCHW.  w1: (C//r, C) first Linear weight (no bias).
    w2: (C, C//r) second Linear weight (no bias).  Returns (B, C, H, W)."""
    B, C, H, W = x.shape
    HW = H * W
    hidden = w1.shape[0]
    assert w1.shape == (hidden, C) and w2.shape == (C, hidden)

    # One-time tiny weight transposes (no per-step XLU transpose in-kernel).
    w1t = jnp.transpose(w1)               # (C, hidden)
    w2t = jnp.transpose(w2)               # (hidden, C)

    # Always spatial-on-lanes: a pure reshape, never a full-tensor transpose.
    x3 = x.reshape(B, C, HW)

    vmem_cap = _vmem_capacity_bytes()
    num_cores = _num_tensorcores()
    budget = _block_budget_bytes(vmem_cap)
    per_sample = C * HW * x.dtype.itemsize

    if per_sample <= budget:
        out3 = _se_single_pass(x3, w1t, w2t, budget, num_cores)
    else:
        out3 = _se_two_pass(x3, w1t, w2t, budget, num_cores)

    return out3.reshape(B, C, H, W)


def _reference(x, w1, w2):
    # Pure-JAX reference mirroring the PyTorch module.
    y = jnp.mean(x, axis=(2, 3))                    # (B, C)
    h = jnp.maximum(y @ w1.T, 0.0)                  # (B, C//r)
    s = jax.nn.sigmoid(h @ w2.T)                    # (B, C)
    return x * s[:, :, None, None]


if __name__ == "__main__":
    key = jax.random.PRNGKey(0)
    B, C, H, W, r = 2, 8, 16, 16, 4
    hidden = C // r

    kx, k1, k2 = jax.random.split(key, 3)
    x = jax.random.normal(kx, (B, C, H, W), dtype=jnp.float32)
    # Deterministic "Kaiming-ish" init for the two bias-free Linear weights.
    w1 = jax.random.normal(k1, (hidden, C), dtype=jnp.float32) * (1.0 / C) ** 0.5
    w2 = jax.random.normal(k2, (C, hidden), dtype=jnp.float32) * (1.0 / hidden) ** 0.5

    out = jax.block_until_ready(se_block(x, w1, w2))
    ref = _reference(x, w1, w2)

    assert out.shape == x.shape and out.dtype == x.dtype
    assert jnp.allclose(out, ref, atol=1e-5, rtol=1e-5)
    print("KERNEL_OK")
</pallas_src>

<mosaic_0001>
module attributes {stable_mosaic.version = 11 : i64} {
  func.func @_se_fused_kernel(%arg0: i32, %arg1: memref<2x8x256xf32, #tpu.memory_space<vmem>>, %arg2: memref<8x2xf32, #tpu.memory_space<vmem>>, %arg3: memref<2x8xf32, #tpu.memory_space<vmem>>, %arg4: memref<2x8x256xf32, #tpu.memory_space<vmem>>) attributes {dimension_semantics = [#tpu.dimension_semantics<parallel>], iteration_bounds = array<i64: 1>, scalar_prefetch = 0 : i64, scratch_operands = 0 : i64, tpu.core_type = #tpu.core_type<tc>, window_params = [{transform_indices = @transform_0, window_bounds = array<i64: 2, 8, 256>}, {pipeline_mode = #tpu.pipeline_mode<synchronous>, transform_indices = @transform_1, window_bounds = array<i64: 8, 2>}, {pipeline_mode = #tpu.pipeline_mode<synchronous>, transform_indices = @transform_2, window_bounds = array<i64: 2, 8>}, {transform_indices = @transform_3, window_bounds = array<i64: 2, 8, 256>}]} {
    %c0 = arith.constant 0 : index
    %c0_0 = arith.constant 0 : index
    %c0_1 = arith.constant 0 : index
    %0 = vector.load %arg1[%c0, %c0_0, %c0_1] : memref<2x8x256xf32, #tpu.memory_space<vmem>>, vector<2x8x256xf32>
    %cst = arith.constant dense<0.000000e+00> : vector<2x8xf32>
    %1 = vector.multi_reduction <add>, %0, %cst [2] : vector<2x8x256xf32> to vector<2x8xf32>
    %cst_2 = arith.constant 2.560000e+02 : f32
    %2 = vector.broadcast %cst_2 : f32 to vector<2x8xf32>
    %3 = arith.divf %1, %2 : vector<2x8xf32>
    %c0_3 = arith.constant 0 : index
    %c0_4 = arith.constant 0 : index
    %4 = vector.load %arg2[%c0_3, %c0_4] : memref<8x2xf32, #tpu.memory_space<vmem>>, vector<8x2xf32>
    %cst_5 = arith.constant dense<0.000000e+00> : vector<2x2xf32>
    %5 = tpu.matmul %3, %4, %cst_5 {dimension_numbers = #tpu.dot_dimension_numbers<[1], [0], [0], [1], [0, 0, 1, 1], [], []>} : vector<2x8xf32>, vector<8x2xf32>, vector<2x2xf32> -> vector<2x2xf32>
    %cst_6 = arith.constant 0.000000e+00 : f32
    %6 = vector.broadcast %cst_6 : f32 to vector<2x2xf32>
    %7 = arith.maximumf %5, %6 : vector<2x2xf32>
    %c0_7 = arith.constant 0 : index
    %c0_8 = arith.constant 0 : index
    %8 = vector.load %arg3[%c0_7, %c0_8] : memref<2x8xf32, #tpu.memory_space<vmem>>, vector<2x8xf32>
    %cst_9 = arith.constant dense<0.000000e+00> : vector<2x8xf32>
    %9 = tpu.matmul %7, %8, %cst_9 {dimension_numbers = #tpu.dot_dimension_numbers<[1], [0], [0], [1], [0, 0, 1, 1], [], []>} : vector<2x2xf32>, vector<2x8xf32>, vector<2x8xf32> -> vector<2x8xf32>
    %10 = arith.negf %9 : vector<2x8xf32>
    %11 = math.exp %10 : vector<2x8xf32>
    %cst_10 = arith.constant 1.000000e+00 : f32
    %12 = vector.broadcast %cst_10 : f32 to vector<2x8xf32>
    %13 = arith.addf %12, %11 : vector<2x8xf32>
    %14 = arith.divf %12, %13 : vector<2x8xf32>
    %c0_11 = arith.constant 0 : index
    %c0_12 = arith.constant 0 : index
    %c0_13 = arith.constant 0 : index
    %15 = vector.load %arg1[%c0_11, %c0_12, %c0_13] : memref<2x8x256xf32, #tpu.memory_space<vmem>>, vector<2x8x256xf32>
    %16 = vector.shape_cast %14 : vector<2x8xf32> to vector<2x8x1xf32>
    %17 = vector.broadcast %16 : vector<2x8x1xf32> to vector<2x8x256xf32>
    %18 = arith.mulf %15, %17 : vector<2x8x256xf32>
    %c0_14 = arith.constant 0 : index
    %c0_15 = arith.constant 0 : index
    %c0_16 = arith.constant 0 : index
    %19 = vector.load %arg4[%c0_14, %c0_15, %c0_16] : memref<2x8x256xf32, #tpu.memory_space<vmem>>, vector<2x8x256xf32>
    tpu.vector_store %arg4[%c0_14, %c0_15, %c0_16], %18 {strides = array<i32>} : memref<2x8x256xf32, #tpu.memory_space<vmem>>, vector<2x8x256xf32>,
    return
  }
  func.func @transform_0(%arg0: i32) -> (i32, i32, i32) {
    %c0_i32 = arith.constant 0 : i32
    %c0_i32_0 = arith.constant 0 : i32
    %c0_i32_1 = arith.constant 0 : i32
    return %arg0, %c0_i32, %c0_i32_0 : i32, i32, i32
  }
  func.func @transform_1(%arg0: i32) -> (i32, i32) {
    %c0_i32 = arith.constant 0 : i32
    %c0_i32_0 = arith.constant 0 : i32
    %c0_i32_1 = arith.constant 0 : i32
    return %c0_i32, %c0_i32_0 : i32, i32
  }
  func.func @transform_2(%arg0: i32) -> (i32, i32) {
    %c0_i32 = arith.constant 0 : i32
    %c0_i32_0 = arith.constant 0 : i32
    %c0_i32_1 = arith.constant 0 : i32
    return %c0_i32, %c0_i32_0 : i32, i32
  }
  func.func @transform_3(%arg0: i32) -> (i32, i32, i32) {
    %c0_i32 = arith.constant 0 : i32
    %c0_i32_0 = arith.constant 0 : i32
    %c0_i32_1 = arith.constant 0 : i32
    return %arg0, %c0_i32, %c0_i32_0 : i32, i32, i32
  }
}

</mosaic_0001>

<llo_original>
// kernel: tpu_custom_call.1
$region0: #{tpu_custom_call.1}
  #allocation0 [shape = 'u32[]', space=smem, size = 0x4, offset = 0x4, fixed_abs, tag = 'smem constant byte address 0x4 - core index']
  #allocation1 [shape = 'u32[144,128]{1,0:T(1,128)}', space=vmem, size = 0x12000, scoped, tag = 'internal scratch']
  %s0 = inlined_call_operand.hbm [shape: f32[2,8,256], index: 0, kind: input, shape index: {}]
  %s1 = inlined_call_operand.vmem [shape: f32[8,2], index: 1, kind: input, shape index: {}]
  %s2 = inlined_call_operand.vmem [shape: f32[2,8], index: 2, kind: input, shape index: {}]
  %s3 = inlined_call_operand.hbm [shape: f32[2,8,256], index: 3, kind: output, shape index: {}]
  %s4 = sld [smem:[#allocation0]]
  $region26: #{tpu_custom_call.1} parent=0
    _
  %s6 = ssub.s32 1, %s4
  %s7 = scalar_select 0, %s6, %s4
  $region1: #{tpu_custom_call.1} parent=0
    #allocation2 [shape = 'u8[16384]{0}', space=vmem, size = 0x4000, scoped, tag = 'input window, operand 0, single buffered']
    #allocation3 [shape = 's32[1]{0}', space=sflag, size = 0x4, scoped, tag = 'scoped memory for tpu_custom_call.1']
    #allocation4 [shape = 's32[1]{0}', space=sflag, size = 0x4, scoped, tag = 'scoped memory for tpu_custom_call.1']
    #allocation5 [shape = 'u8[16384]{0}', space=vmem, size = 0x4000, scoped, tag = 'output window, operand 0, single buffered']
    %8 = vsyncpa [#allocation3], 0
    %9 = vsyncpa [#allocation4], 0
    // Predicated region
    $region2: #{tpu_custom_call.1} parent=1 // pred_check
      _
    $region3: #{tpu_custom_call.1} parent=1 // pred_check_branch
      %11 = sbr.rel (0) target = $region5
    $region4: #{tpu_custom_call.1} parent=1 // pred_region
      %s13 = ssub.s32 512, 512
      %14 = vsyncadd [#allocation3], %s13
      %s15 = sshll.u32 [#allocation2], 4
      %s16 = int_to_ptr.vmem [resolvable:$true] %s15
      %21 = dma.hbm_to_vmem [thread:$0]  %s0, 512, %s16, [#allocation3], 256, 256, 16
    $region5: #{tpu_custom_call.1} parent=1 // pred_fallthru
      _
    // Predicated region
    $region6: #{tpu_custom_call.1} parent=1 // pred_check
      _
    $region7: #{tpu_custom_call.1} parent=1 // pred_check_branch
      %23 = sbr.rel (0) target = $region9
    $region8: #{tpu_custom_call.1} parent=1 // pred_region
      _
    $region9: #{tpu_custom_call.1} parent=1 // pred_fallthru
      _
    // Predicated region
    $region10: #{tpu_custom_call.1} parent=1 // pred_check
      _
    $region11: #{tpu_custom_call.1} parent=1 // pred_check_branch
      %25 = sbr.rel (0) target = $region13
    $region12: #{tpu_custom_call.1} parent=1 // pred_region
      _
    $region13: #{tpu_custom_call.1} parent=1 // pred_fallthru
      _
    // Predicated region
    $region14: #{tpu_custom_call.1} parent=1 // pred_check
      _
    $region15: #{tpu_custom_call.1} parent=1 // pred_check_branch
      %27 = sbr.rel (0) target = $region17
    $region16: #{tpu_custom_call.1} parent=1 // pred_region
      %28 = dma.done [#allocation3], 512
    $region17: #{tpu_custom_call.1} parent=1 // pred_fallthru
      _
    %v29 = vld [vmem:[#allocation2] sm:$0xff]
    %v30 = vld [vmem:[#allocation2 + $0x8] sm:$0xff]
    %v31 = vld [vmem:[#allocation2 + $0x10] sm:$0xff]
    %v32 = vld [vmem:[#allocation2 + $0x18] sm:$0xff]
    %v33 = vadd.f32 %v29, %v30
    %34 = vadd.xlane.f32.xlu0 %v33
    %v35 = vpop.xlane.xlu0 %34
    %v36 = vadd.f32 %v31, %v32
    %37 = vadd.xlane.f32.xlu0 %v36
    %v38 = vpop.xlane.xlu0 %37
    %v39 = vrcp.pop 256.0
    %v40 = vmul.f32 %v35, %v39
    %v41 = vmul.f32 %v38, %v39
    %v42 = vld [vmem:[%s1] sm:$0xff]
    %v45 = vlaneseq
    %v46 = vand.u32 %v45, 127
    %v47 = vlaneseq
    %v48 = vshrl.u32 %v47, 7
    %v49 = vsub.s32 %v46, %v48
    %v50 = vrot.slane %v40, %v49
    %v51 = vlaneseq
    %v52 = vshrl.u32 %v51, 7
    %v53 = vsub.s32 %v46, %v52
    %v54 = vrot.slane %v41, %v53
    %vm55 = vcmask 1041409
    %v56 = vsel %vm55, %v54, %v50
    %vm57 = vcmask 64512
    %v58 = vsel %vm57, %v56, 0
    %60 = vmatprep.subr.mxu0 0.0
    %61 = vmatpush1.msra.mxu0 %v42
    %62 = vmatprep.subr.mxu0 0.0
    %63 = vmatpush1.msra.mxu0 0.0
    %64 = vmatprep.subr.mxu0 0.0
    %65 = vmatpush1.msra.mxu0 0.0
    %66 = vmatprep.subr.mxu0 0.0
    %67 = vmatpush1.msra.mxu0 0.0
    %68 = vmatprep.subr.mxu0 0.0
    %69 = vmatpush1.msra.mxu0 0.0
    %70 = vmatprep.subr.mxu0 0.0
    %71 = vmatpush1.msra.mxu0 0.0
    %72 = vmatprep.subr.mxu0 0.0
    %73 = vmatpush1.msra.mxu0 0.0
    %74 = vmatprep.subr.mxu0 0.0
    %75 = vmatpush1.msra.mxu0 0.0
    %76 = vmatprep.subr.mxu0 0.0
    %77 = vmatpush1.msra.mxu0 0.0
    %78 = vmatprep.subr.mxu0 0.0
    %79 = vmatpush1.msra.mxu0 0.0
    %80 = vmatprep.subr.mxu0 0.0
    %81 = vmatpush1.msra.mxu0 0.0
    %82 = vmatprep.subr.mxu0 0.0
    %83 = vmatpush1.msra.mxu0 0.0
    %84 = vmatprep.subr.mxu0 0.0
    %85 = vmatpush1.msra.mxu0 0.0
    %86 = vmatprep.subr.mxu0 0.0
    %87 = vmatpush1.msra.mxu0 0.0
    %88 = vmatprep.subr.mxu0 0.0
    %89 = vmatpush1.msra.mxu0 0.0
    %90 = vmatprep.subr.mxu0 0.0
    %91 = vmatpush1.msra.mxu0 0.0
    %92 = vmatprep.subr.mxu0 0.0
    %93 = vmatpush1.msra.mxu0 0.0
    %94 = vmatprep.subr.mxu0 0.0
    %95 = vmatpush1.msra.mxu0 0.0
    %96 = vmatprep.subr.mxu0 0.0
    %97 = vmatpush1.msra.mxu0 0.0
    %98 = vmatprep.subr.mxu0 0.0
    %99 = vmatpush1.msra.mxu0 0.0
    %100 = vmatprep.subr.mxu0 0.0
    %101 = vmatpush1.msra.mxu0 0.0
    %102 = vmatprep.subr.mxu0 0.0
    %103 = vmatpush1.msra.mxu0 0.0
    %104 = vmatprep.subr.mxu0 0.0
    %105 = vmatpush1.msra.mxu0 0.0
    %106 = vmatprep.subr.mxu0 0.0
    %107 = vmatpush1.msra.mxu0 0.0
    %108 = vmatprep.subr.mxu0 0.0
    %109 = vmatpush1.msra.mxu0 0.0
    %110 = vmatprep.subr.mxu0 0.0
    %111 = vmatpush1.msra.mxu0 0.0
    %112 = vmatprep.subr.mxu0 0.0
    %113 = vmatpush1.msra.mxu0 0.0
    %114 = vmatprep.subr.mxu0 0.0
    %115 = vmatpush1.msra.mxu0 0.0
    %116 = vmatprep.subr.mxu0 0.0
    %117 = vmatpush1.msra.mxu0 0.0
    %118 = vmatprep.subr.mxu0 0.0
    %119 = vmatpush1.msra.mxu0 0.0
    %120 = vmatprep.subr.mxu0 0.0
    %121 = vmatpush1.msra.mxu0 0.0
    %122 = vmatprep.subr.mxu0 0.0
    %123 = vmatpush1.msra.mxu0 0.0
    %124 = vmatprep.mubr.f32.mxu0 0.0
    %125 = vmatmul.mubr.f32.gmra.mrb[0].mxu0 %v58
    %v126 = vpop.f32.mrb[0].mxu0
    %v127 = vadd.f32 0.0, %v126
    %v128 = vpop.f32.mrb[0].mxu0
    %129 = vdwg.mxu0
    %v130 = vmax.f32 %v127, 0.0
    %v131 = vld [vmem:[%s2] sm:$0x3]
    %vm132 = vcmask 15360
    %v134 = vsel %vm132, %v130, 0
    %vm136 = vcmask 1041408
    %v138 = vsel %vm136, %v131, 0
    %140 = vmatprep.subr.mxu0 0.0
    %141 = vmatpush1.msra.mxu0 %v138
    %142 = vmatprep.subr.mxu0 0.0
    %143 = vmatpush1.msra.mxu0 0.0
    %144 = vmatprep.subr.mxu0 0.0
    %145 = vmatpush1.msra.mxu0 0.0
    %146 = vmatprep.subr.mxu0 0.0
    %147 = vmatpush1.msra.mxu0 0.0
    %148 = vmatprep.subr.mxu0 0.0
    %149 = vmatpush1.msra.mxu0 0.0
    %150 = vmatprep.subr.mxu0 0.0
    %151 = vmatpush1.msra.mxu0 0.0
    %152 = vmatprep.subr.mxu0 0.0
    %153 = vmatpush1.msra.mxu0 0.0
    %154 = vmatprep.subr.mxu0 0.0
    %155 = vmatpush1.msra.mxu0 0.0
    %156 = vmatprep.subr.mxu0 0.0
    %157 = vmatpush1.msra.mxu0 0.0
    %158 = vmatprep.subr.mxu0 0.0
    %159 = vmatpush1.msra.mxu0 0.0
    %160 = vmatprep.subr.mxu0 0.0
    %161 = vmatpush1.msra.mxu0 0.0
    %162 = vmatprep.subr.mxu0 0.0
    %163 = vmatpush1.msra.mxu0 0.0
    %164 = vmatprep.subr.mxu0 0.0
    %165 = vmatpush1.msra.mxu0 0.0
    %166 = vmatprep.subr.mxu0 0.0
    %167 = vmatpush1.msra.mxu0 0.0
    %168 = vmatprep.subr.mxu0 0.0
    %169 = vmatpush1.msra.mxu0 0.0
    %170 = vmatprep.subr.mxu0 0.0
    %171 = vmatpush1.msra.mxu0 0.0
    %172 = vmatprep.subr.mxu0 0.0
    %173 = vmatpush1.msra.mxu0 0.0
    %174 = vmatprep.subr.mxu0 0.0
    %175 = vmatpush1.msra.mxu0 0.0
    %176 = vmatprep.subr.mxu0 0.0
    %177 = vmatpush1.msra.mxu0 0.0
    %178 = vmatprep.subr.mxu0 0.0
    %179 = vmatpush1.msra.mxu0 0.0
    %180 = vmatprep.subr.mxu0 0.0
    %181 = vmatpush1.msra.mxu0 0.0
    %182 = vmatprep.subr.mxu0 0.0
    %183 = vmatpush1.msra.mxu0 0.0
    %184 = vmatprep.subr.mxu0 0.0
    %185 = vmatpush1.msra.mxu0 0.0
    %186 = vmatprep.subr.mxu0 0.0
    %187 = vmatpush1.msra.mxu0 0.0
    %188 = vmatprep.subr.mxu0 0.0
    %189 = vmatpush1.msra.mxu0 0.0
    %190 = vmatprep.subr.mxu0 0.0
    %191 = vmatpush1.msra.mxu0 0.0
    %192 = vmatprep.subr.mxu0 0.0
    %193 = vmatpush1.msra.mxu0 0.0
    %194 = vmatprep.subr.mxu0 0.0
    %195 = vmatpush1.msra.mxu0 0.0
    %196 = vmatprep.subr.mxu0 0.0
    %197 = vmatpush1.msra.mxu0 0.0
    %198 = vmatprep.subr.mxu0 0.0
    %199 = vmatpush1.msra.mxu0 0.0
    %200 = vmatprep.subr.mxu0 0.0
    %201 = vmatpush1.msra.mxu0 0.0
    %202 = vmatprep.subr.mxu0 0.0
    %203 = vmatpush1.msra.mxu0 0.0
    %204 = vmatprep.mubr.f32.mxu0 0.0
    %205 = vmatmul.mubr.f32.gmra.mrb[0].mxu0 %v134
    %v206 = vpop.f32.mrb[0].mxu0
    %v207 = vadd.f32 0.0, %v206
    %v208 = vpop.f32.mrb[0].mxu0
    %209 = vdwg.mxu0
    %v210 = vxor.u32 %v207, 2147483648
    %v211 = vmul.f32 %v210, 1.442695
    %v212 = vpow.pop %v211
    %v213 = vadd.f32 %v212, 1.0
    %v214 = vrcp.pop %v213
    %v215 = vmul.f32 1.0, %v214
    %v216 = vlaneseq
    %v217 = vshrl.u32 %v216, 7
    %v218 = vsub.s32 0, %v217
    %v219 = vrot.slane %v215, %v218
    %221 = vbcast.lane.b32.xlu0 %v219, 256
    %v222 = vpop.permute.xlu0 %221
    %v223 = vlaneseq
    %v224 = vshrl.u32 %v223, 7
    %v225 = vsub.s32 1, %v224
    %v226 = vrot.slane %v215, %v225
    %228 = vbcast.lane.b32.xlu0 %v226, 256
    %v229 = vpop.permute.xlu0 %228
    %v230 = vmul.f32 %v29, %v222
    %v231 = vmul.f32 %v30, %v222
    %v232 = vmul.f32 %v31, %v229
    %v233 = vmul.f32 %v32, %v229
    %234 = vst [vmem:[#allocation5] sm:$0xff] %v230
    %235 = vst [vmem:[#allocation5 + $0x8] sm:$0xff] %v231
    %236 = vst [vmem:[#allocation5 + $0x10] sm:$0xff] %v232
    %237 = vst [vmem:[#allocation5 + $0x18] sm:$0xff] %v233
    // Predicated region
    $region18: #{tpu_custom_call.1} parent=1 // pred_check
      _
    $region19: #{tpu_custom_call.1} parent=1 // pred_check_branch
      %239 = sbr.rel (0) target = $region21
    $region20: #{tpu_custom_call.1} parent=1 // pred_region
      %s241 = ssub.s32 512, 512
      %242 = vsyncadd [#allocation4], %s241
      %s243 = sshll.u32 [#allocation5], 4
      %s244 = int_to_ptr.vmem [resolvable:$true] %s243
      %249 = dma.vmem_to_hbm [thread:$0]  %s244, 512, %s3, [#allocation4], 256, 256, 16
    $region21: #{tpu_custom_call.1} parent=1 // pred_fallthru
      _
    // Predicated region
    $region22: #{tpu_custom_call.1} parent=1 // pred_check
      _
    $region23: #{tpu_custom_call.1} parent=1 // pred_check_branch
      %251 = sbr.rel (0) target = $region25
    $region24: #{tpu_custom_call.1} parent=1 // pred_region
      %252 = dma.done [#allocation4], 512
    $region25: #{tpu_custom_call.1} parent=1 // pred_fallthru
      _
    %253 = vsyncpa [#allocation3], 1
    %254 = vsyncpa [#allocation4], 1

</llo_original>
